<compile_context>
chip_gen: v6e
topology: v6e:2x2x1
jax: 0.10.0
libtpu: 0.0.40
codegen_flags: <defaults>
</compile_context>

<pallas_src>
import math
from functools import partial

import jax
import jax.numpy as jnp
from jax.experimental import pallas as pl
from jax.experimental.pallas import tpu as pltpu


def _class_exp_loss_kernel(x_ref, t_ref, o_ref, *, a, hw, ts, sub, nchunks,
                           need_mask):
    # x_ref: (1, C, TS, L) logits tile (native dtype)
    # t_ref: (1, TS, L)    target tile (int or float)
    # o_ref: (1, 1, 1, L)  f32 per-step partial sums (reduced over sublanes)
    C = x_ref.shape[1]
    L = x_ref.shape[3]
    af = jnp.float32(a)
    j = pl.program_id(1)

    if need_mask:
        # Hoisted once per grid step (JAX does not CSE broadcast_in_dim).
        flat0 = (jax.lax.broadcasted_iota(jnp.int32, (sub, L), 0) * L
                 + jax.lax.broadcasted_iota(jnp.int32, (sub, L), 1))

    def chunk_vals(off):
        # Running argmax over the channel axis; strict '>' preserves
        # first-maximal-index semantics (matches torch.argmax).  Compares
        # stay in the native dtype; only the index/target are cast for exp.
        bv = x_ref[0, 0, pl.ds(off, sub), :]
        bi = jnp.zeros((sub, L), jnp.float32)
        if C <= 8:
            for c in range(1, C):
                xc = x_ref[0, c, pl.ds(off, sub), :]
                upd = xc > bv
                bv = jnp.where(upd, xc, bv)
                bi = jnp.where(upd, jnp.float32(c), bi)
        else:
            def ch_body(c, carry):
                bvi, bii = carry
                xc = x_ref[0, c, pl.ds(off, sub), :]
                upd = xc > bvi
                return (jnp.where(upd, xc, bvi),
                        jnp.where(upd, c.astype(jnp.float32), bii))
            bv, bi = jax.lax.fori_loop(1, C, ch_body, (bv, bi), unroll=2)

        tgt = t_ref[0, pl.ds(off, sub), :].astype(jnp.float32)
        vals = jnp.exp(af * jnp.abs(bi - tgt))          # EUP slot
        if need_mask:
            # Padded / out-of-range elements select 0.0 (select, not multiply,
            # so garbage/inf from the pad region never leaks into the sum).
            limit = hw - (j * ts + off) * L
            vals = jnp.where(flat0 < limit, vals, 0.0)
        return vals

    if nchunks == 1:
        acc = chunk_vals(0)
    else:
        def chunk_body(ci, acc):
            off = pl.multiple_of(ci * sub, sub)
            return acc + chunk_vals(off)
        acc = jax.lax.fori_loop(0, nchunks, chunk_body,
                                jnp.zeros((sub, L), jnp.float32))

    # One cross-sublane reduce per grid step (XLU slot, off the VALU path).
    o_ref[0, 0] = jnp.sum(acc, axis=0, keepdims=True)


def class_exp_loss(inputs, target, a=2):
    """inputs: (N, C, H, W) logits; target: (N, H, W) label map (int or float)."""
    N, C, H, W = inputs.shape
    assert target.shape == (N, H, W)
    HW = H * W
    M = N * HW
    L = 128

    HW_pad = pl.cdiv(HW, L) * L
    x = inputs.reshape(N, C, HW)
    t = target.reshape(N, HW)
    if HW_pad != HW:
        # TODO(synk): odd spatial sizes take one extra HBM pass for the pad;
        # the padded tail is masked out inside the kernel.
        x = jnp.pad(x, ((0, 0), (0, 0), (0, HW_pad - HW)))
        t = jnp.pad(t, ((0, 0), (0, HW_pad - HW)))
    R = HW_pad // L
    x4 = x.reshape(N, C, R, L)
    t3 = t.reshape(N, R, L)

    # ~8 MiB of logits+target per grid step: amortizes the ~0.35us/step
    # pipeline overhead (matters most on v7x's 3.2 TB/s HBM) while keeping
    # the double-buffered footprint (~16 MiB) comfortably under v7x's 64 MiB
    # physical VMEM.
    bytes_per_row = C * L * x4.dtype.itemsize + L * t3.dtype.itemsize
    budget = 8 * 1024 * 1024
    rows = budget // bytes_per_row

    if R <= 64:
        TS, SUB, NCH = R, R, 1                      # whole plane is one tile
    elif rows >= 64:
        TS = max(64, (min(rows, R) // 64) * 64)     # multiple of 64
        SUB = 64
        NCH = TS // 64
    else:                                           # huge-C fallback
        TS = max(8, (rows // 8) * 8)
        SUB, NCH = TS, 1
    NT = pl.cdiv(R, TS)
    need_mask = (NT * TS * L) != HW

    kernel = partial(_class_exp_loss_kernel, a=float(a), hw=HW, ts=TS, sub=SUB,
                     nchunks=NCH, need_mask=need_mask)

    cost = pl.CostEstimate(
        flops=(3 * C + 4) * M,
        transcendentals=M,
        bytes_accessed=(N * C * HW_pad * x4.dtype.itemsize
                        + N * HW_pad * t3.dtype.itemsize
                        + N * NT * L * 4),
    )

    partials = pl.pallas_call(
        kernel,
        out_shape=jax.ShapeDtypeStruct((N, NT, 1, L), jnp.float32),
        grid=(N, NT),
        in_specs=[
            pl.BlockSpec((1, C, TS, L), lambda n, j: (n, 0, j, 0)),
            pl.BlockSpec((1, TS, L), lambda n, j: (n, j, 0)),
        ],
        out_specs=pl.BlockSpec((1, 1, 1, L), lambda n, j: (n, j, 0, 0)),
        compiler_params=pltpu.CompilerParams(
            # No cross-step state -> both axes shard across v7x's 2 TCs.
            dimension_semantics=("parallel", "parallel"),
            # Raise v5e's 16 MiB scoped default; stays < v7x's 64 MiB phys.
            vmem_limit_bytes=48 * 1024 * 1024,
        ),
        cost_estimate=cost,
    )(x4, t3)

    # mean(4*(exp(a*d)-1)/(exp(4a)-1) + 1) == scale*mean(exp(a*d)) + (1-scale)
    scale = 4.0 / (math.exp(4.0 * float(a)) - 1.0)
    mean_exp = jnp.sum(partials) / jnp.float32(M)
    return jnp.float32(scale) * mean_exp + jnp.float32(1.0 - scale)


def _reference(inputs, target, a=2):
    pred = jnp.argmax(inputs, axis=1).astype(jnp.float32)
    tgt = target.astype(jnp.float32)
    diff = jnp.abs(pred - tgt)
    return jnp.mean(4.0 * (jnp.exp(a * diff) - 1.0)
                    / (jnp.exp(4.0 * a) - 1.0) + 1.0)


if __name__ == "__main__":
    key = jax.random.PRNGKey(0)
    k1, k2 = jax.random.split(key)

    N, C, H, W = 2, 4, 16, 16
    inputs = jax.random.normal(k1, (N, C, H, W), dtype=jnp.float32)
    target = jax.random.randint(k2, (N, H, W), 0, C).astype(jnp.int32)

    loss = class_exp_loss(inputs, target, a=2)
    loss = jax.block_until_ready(loss)

    ref = _reference(inputs, target, a=2)
    assert jnp.allclose(loss, ref, rtol=1e-5, atol=1e-5), (loss, ref)

    print("KERNEL_OK")
</pallas_src>

<mosaic_0001>
module attributes {stable_mosaic.version = 11 : i64} {
  func.func @_class_exp_loss_kernel(%arg0: i32, %arg1: i32, %arg2: memref<1x4x2x128xf32, #tpu.memory_space<vmem>>, %arg3: memref<1x2x128xi32, #tpu.memory_space<vmem>>, %arg4: memref<1x1x1x128xf32, #tpu.memory_space<vmem>>) attributes {dimension_semantics = [#tpu.dimension_semantics<parallel>, #tpu.dimension_semantics<parallel>], iteration_bounds = array<i64: 2, 1>, scalar_prefetch = 0 : i64, scratch_operands = 0 : i64, tpu.core_type = #tpu.core_type<tc>, window_params = [{transform_indices = @transform_0, window_bounds = array<i64: 1, 4, 2, 128>}, {transform_indices = @transform_1, window_bounds = array<i64: 1, 2, 128>}, {transform_indices = @transform_2, window_bounds = array<i64: 1, 1, 1, 128>}]} {
    %c0 = arith.constant 0 : index
    %c0_0 = arith.constant 0 : index
    %c0_1 = arith.constant 0 : index
    %c0_2 = arith.constant 0 : index
    %0 = vector.load %arg2[%c0, %c0_0, %c0_1, %c0_2] : memref<1x4x2x128xf32, #tpu.memory_space<vmem>>, vector<1x1x2x128xf32>
    %1 = vector.shape_cast %0 : vector<1x1x2x128xf32> to vector<2x128xf32>
    %cst = arith.constant 0.000000e+00 : f32
    %2 = vector.broadcast %cst : f32 to vector<2x128xf32>
    %c0_3 = arith.constant 0 : index
    %c1 = arith.constant 1 : index
    %c0_4 = arith.constant 0 : index
    %c0_5 = arith.constant 0 : index
    %3 = vector.load %arg2[%c0_3, %c1, %c0_4, %c0_5] : memref<1x4x2x128xf32, #tpu.memory_space<vmem>>, vector<1x1x2x128xf32>
    %4 = vector.shape_cast %3 : vector<1x1x2x128xf32> to vector<2x128xf32>
    %5 = arith.cmpf ogt, %4, %1 : vector<2x128xf32>
    %6 = arith.select %5, %4, %1 : vector<2x128xi1>, vector<2x128xf32>
    %cst_6 = arith.constant 1.000000e+00 : f32
    %7 = vector.broadcast %cst_6 : f32 to vector<2x128xf32>
    %8 = arith.select %5, %7, %2 : vector<2x128xi1>, vector<2x128xf32>
    %c0_7 = arith.constant 0 : index
    %c2 = arith.constant 2 : index
    %c0_8 = arith.constant 0 : index
    %c0_9 = arith.constant 0 : index
    %9 = vector.load %arg2[%c0_7, %c2, %c0_8, %c0_9] : memref<1x4x2x128xf32, #tpu.memory_space<vmem>>, vector<1x1x2x128xf32>
    %10 = vector.shape_cast %9 : vector<1x1x2x128xf32> to vector<2x128xf32>
    %11 = arith.cmpf ogt, %10, %6 : vector<2x128xf32>
    %12 = arith.select %11, %10, %6 : vector<2x128xi1>, vector<2x128xf32>
    %cst_10 = arith.constant 2.000000e+00 : f32
    %13 = vector.broadcast %cst_10 : f32 to vector<2x128xf32>
    %14 = arith.select %11, %13, %8 : vector<2x128xi1>, vector<2x128xf32>
    %c0_11 = arith.constant 0 : index
    %c3 = arith.constant 3 : index
    %c0_12 = arith.constant 0 : index
    %c0_13 = arith.constant 0 : index
    %15 = vector.load %arg2[%c0_11, %c3, %c0_12, %c0_13] : memref<1x4x2x128xf32, #tpu.memory_space<vmem>>, vector<1x1x2x128xf32>
    %16 = vector.shape_cast %15 : vector<1x1x2x128xf32> to vector<2x128xf32>
    %17 = arith.cmpf ogt, %16, %12 : vector<2x128xf32>
    %cst_14 = arith.constant 3.000000e+00 : f32
    %18 = vector.broadcast %cst_14 : f32 to vector<2x128xf32>
    %19 = arith.select %17, %18, %14 : vector<2x128xi1>, vector<2x128xf32>
    %c0_15 = arith.constant 0 : index
    %c0_16 = arith.constant 0 : index
    %c0_17 = arith.constant 0 : index
    %20 = vector.load %arg3[%c0_15, %c0_16, %c0_17] : memref<1x2x128xi32, #tpu.memory_space<vmem>>, vector<1x2x128xi32>
    %21 = vector.shape_cast %20 : vector<1x2x128xi32> to vector<2x128xi32>
    %22 = arith.sitofp %21 : vector<2x128xi32> to vector<2x128xf32>
    %23 = arith.subf %19, %22 : vector<2x128xf32>
    %24 = math.absf %23 : vector<2x128xf32>
    %cst_18 = arith.constant 2.000000e+00 : f32
    %25 = vector.broadcast %cst_18 : f32 to vector<2x128xf32>
    %26 = arith.mulf %25, %24 : vector<2x128xf32>
    %27 = math.exp %26 : vector<2x128xf32>
    %cst_19 = arith.constant dense<0.000000e+00> : vector<128xf32>
    %28 = vector.multi_reduction <add>, %27, %cst_19 [0] : vector<2x128xf32> to vector<128xf32>
    %29 = vector.shape_cast %28 : vector<128xf32> to vector<1x128xf32>
    %c0_20 = arith.constant 0 : index
    %c0_21 = arith.constant 0 : index
    %c0_22 = arith.constant 0 : index
    %c0_23 = arith.constant 0 : index
    %30 = vector.load %arg4[%c0_20, %c0_21, %c0_22, %c0_23] : memref<1x1x1x128xf32, #tpu.memory_space<vmem>>, vector<1x1x1x128xf32>
    %31 = vector.shape_cast %30 : vector<1x1x1x128xf32> to vector<1x128xf32>
    %32 = vector.shape_cast %29 : vector<1x128xf32> to vector<1x1x1x128xf32>
    tpu.vector_store %arg4[%c0_20, %c0_21, %c0_22, %c0_23], %32 {strides = array<i32>} : memref<1x1x1x128xf32, #tpu.memory_space<vmem>>, vector<1x1x1x128xf32>,
    return
  }
  func.func @transform_0(%arg0: i32, %arg1: i32) -> (i32, i32, i32, i32) {
    %c0_i32 = arith.constant 0 : i32
    %c0_i32_0 = arith.constant 0 : i32
    %c0_i32_1 = arith.constant 0 : i32
    return %arg0, %c0_i32, %arg1, %c0_i32_0 : i32, i32, i32, i32
  }
  func.func @transform_1(%arg0: i32, %arg1: i32) -> (i32, i32, i32) {
    %c0_i32 = arith.constant 0 : i32
    %c0_i32_0 = arith.constant 0 : i32
    return %arg0, %arg1, %c0_i32 : i32, i32, i32
  }
  func.func @transform_2(%arg0: i32, %arg1: i32) -> (i32, i32, i32, i32) {
    %c0_i32 = arith.constant 0 : i32
    %c0_i32_0 = arith.constant 0 : i32
    %c0_i32_1 = arith.constant 0 : i32
    return %arg0, %arg1, %c0_i32, %c0_i32_0 : i32, i32, i32, i32
  }
}

</mosaic_0001>

<llo_original>
// kernel: tpu_custom_call.1
$region0: #{tpu_custom_call.1}
  #allocation0 [shape = 'u32[]', space=smem, size = 0x4, offset = 0x4, fixed_abs, tag = 'smem constant byte address 0x4 - core index']
  #allocation1 [shape = 'u32[144,128]{1,0:T(1,128)}', space=vmem, size = 0x12000, scoped, tag = 'internal scratch']
  %s0 = inlined_call_operand.hbm [shape: f32[2,4,2,128], index: 0, kind: input, shape index: {}]
  %s1 = inlined_call_operand.hbm [shape: s32[2,2,128], index: 1, kind: input, shape index: {}]
  %s2 = inlined_call_operand.hbm [shape: f32[2,1,1,128], index: 2, kind: output, shape index: {}]
  %s3 = sld [smem:[#allocation0]]
  $region49: #{tpu_custom_call.1} parent=0
    _
  %s5 = ssub.s32 1, %s3
  %s6 = scalar_select 0, %s5, %s3
  $region1: #{tpu_custom_call.1} parent=0
    #allocation2 [shape = 'u8[8192]{0}', space=vmem, size = 0x2000, scoped, tag = 'input window, operand 0']
    #allocation3 [shape = 's32[2]{0}', space=sflag, size = 0x8, scoped, tag = 'scoped memory for tpu_custom_call.1']
    #allocation4 [shape = 's32[2]{0}', space=sflag, size = 0x8, scoped, tag = 'scoped memory for tpu_custom_call.1']
    #allocation5 [shape = 'u8[2048]{0}', space=vmem, size = 0x800, scoped, tag = 'input window, operand 1']
    #allocation6 [shape = 's32[2]{0}', space=sflag, size = 0x8, scoped, tag = 'scoped memory for tpu_custom_call.1']
    #allocation7 [shape = 'u8[1024]{0}', space=vmem, size = 0x400, scoped, tag = 'output window, operand 0']
    %7 = vsyncpa [#allocation3], 0
    %s8 = scalar_lea.sflag [#allocation3], 1
    %9 = vsyncpa %s8, 0
    %10 = vsyncpa [#allocation6], 0
    %s11 = scalar_lea.sflag [#allocation6], 1
    %12 = vsyncpa %s11, 0
    %13 = vsyncpa [#allocation4], 0
    %s14 = scalar_lea.sflag [#allocation4], 1
    %15 = vsyncpa %s14, 0
    loop: start=0, step=1, limit=4
    $region2: #{tpu_custom_call.1} parent=1 // loop_pre_header
      _
    $region3: #{tpu_custom_call.1} parent=1 // loop_header
      %s17 = sphi 0, %s21
      %p18 = scmp.ge.s32.totalorder %s17, 4
      %s24 = sphi 0, %s36
      %s25 = sphi 0, %s32
      %s26 = sphi 0, %s24
      %s27 = sphi 0, %s25
      %s28 = sphi 0, %s26
      %s29 = sphi 0, %s27
      %s41 = sphi 0, %s43
      %s44 = sphi 0, %s41
      %s45 = sphi 0, %s44
      %s61 = sphi 0, %s45
      %s69 = sphi 0, %s71
      %s72 = sphi 0, %s69
      %s73 = sphi 0, %s72
      %s89 = sphi 0, %s73
      %s97 = sphi 0, %s99
      %s100 = sphi 0, %s97
      %s101 = sphi 0, %s100
      %s117 = sphi 0, %s101
    $region4: #{tpu_custom_call.1} parent=1 // loop_header_branch
      %20 = sbr.rel (%p18) target = $region8
    $region5: #{tpu_custom_call.1} parent=1 // loop_body
      %s22 = ssub.s32 %s17, 1
      %s23 = ssub.s32 %s17, 2
      %s30 = sadd.s32 1, %s25
      %p31 = scmp.ge.s32.totalorder %s30, 1
      %s32 = scalar_select %p31, 0, %s30
      %s33 = sadd.s32 1, %s24
      %s34 = scalar_select %p31, %s33, %s24
      %p35 = scmp.ge.s32.totalorder %s34, 2
      %s36 = scalar_select %p35, 0, %s34
      %s37 = ssub.s32 %s24, %s36
      %s38 = ssub.s32 %s25, %s32
      %s39 = sor.u32 %s37, %s38
      %p40 = scmp.eq.s32.totalorder %s39, 0
      %s42 = sadd.s32 %s41, 1
      %s43 = scalar_select %p40, %s41, %s42
      %p46 = pneg %p40
      %p47 = scmp.eq.s32.totalorder %s17, 1
      %p48 = por %p46, %p47
      %p49 = scmp.ne.s32.totalorder %s41, %s44
      %p50 = scmp.eq.s32.totalorder %s17, 0
      %p51 = por %p49, %p50
      %p52 = scmp.ne.s32.totalorder %s41, %s44
      %p53 = scmp.eq.s32.totalorder %s22, 1
      %p54 = por %p52, %p53
      %p55 = scmp.ne.s32.totalorder %s44, %s45
      %p56 = scmp.eq.s32.totalorder %s22, 0
      %p57 = por %p55, %p56
      %p58 = scmp.ne.s32.totalorder %s44, %s45
      %p59 = scmp.eq.s32.totalorder %s23, 1
      %p60 = por %p58, %p59
      %p62 = scmp.ne.s32.totalorder %s45, %s61
      %p63 = scmp.eq.s32.totalorder %s23, 0
      %p64 = por %p62, %p63
      %s65 = ssub.s32 %s24, %s36
      %s66 = ssub.s32 %s25, %s32
      %s67 = sor.u32 %s65, %s66
      %p68 = scmp.eq.s32.totalorder %s67, 0
      %s70 = sadd.s32 %s69, 1
      %s71 = scalar_select %p68, %s69, %s70
      %p74 = pneg %p68
      %p75 = scmp.eq.s32.totalorder %s17, 1
      %p76 = por %p74, %p75
      %p77 = scmp.ne.s32.totalorder %s69, %s72
      %p78 = scmp.eq.s32.totalorder %s17, 0
      %p79 = por %p77, %p78
      %p80 = scmp.ne.s32.totalorder %s69, %s72
      %p81 = scmp.eq.s32.totalorder %s22, 1
      %p82 = por %p80, %p81
      %p83 = scmp.ne.s32.totalorder %s72, %s73
      %p84 = scmp.eq.s32.totalorder %s22, 0
      %p85 = por %p83, %p84
      %p86 = scmp.ne.s32.totalorder %s72, %s73
      %p87 = scmp.eq.s32.totalorder %s23, 1
      %p88 = por %p86, %p87
      %p90 = scmp.ne.s32.totalorder %s73, %s89
      %p91 = scmp.eq.s32.totalorder %s23, 0
      %p92 = por %p90, %p91
      %s93 = ssub.s32 %s24, %s36
      %s94 = ssub.s32 %s25, %s32
      %s95 = sor.u32 %s93, %s94
      %p96 = scmp.eq.s32.totalorder %s95, 0
      %s98 = sadd.s32 %s97, 1
      %s99 = scalar_select %p96, %s97, %s98
      %p102 = pneg %p96
      %p103 = scmp.eq.s32.totalorder %s17, 1
      %p104 = por %p102, %p103
      %p105 = scmp.ne.s32.totalorder %s97, %s100
      %p106 = scmp.eq.s32.totalorder %s17, 0
      %p107 = por %p105, %p106
      %p108 = scmp.ne.s32.totalorder %s97, %s100
      %p109 = scmp.eq.s32.totalorder %s22, 1
      %p110 = por %p108, %p109
      %p111 = scmp.ne.s32.totalorder %s100, %s101
      %p112 = scmp.eq.s32.totalorder %s22, 0
      %p113 = por %p111, %p112
      %p114 = scmp.ne.s32.totalorder %s100, %s101
      %p115 = scmp.eq.s32.totalorder %s23, 1
      %p116 = por %p114, %p115
      %p118 = scmp.ne.s32.totalorder %s101, %s117
      %p119 = scmp.eq.s32.totalorder %s23, 0
      %p120 = por %p118, %p119
      %p121 = scmp.le.s32.totalorder 1, %s17
      %p122 = scmp.lt.s32.totalorder %s17, 3
      %p123 = pnand %p121, %p122
      %p124 = pneg %p123
      // Predicated region
      $region9: #{tpu_custom_call.1} parent=5 // pred_check
        _
      $region10: #{tpu_custom_call.1} parent=5 // pred_check_branch
        %126 = sbr.rel (%p123) target = $region12
      $region11: #{tpu_custom_call.1} parent=5 // pred_region
        %s127 = ssub.s32 %s17, 1
      $region12: #{tpu_custom_call.1} parent=5 // pred_fallthru
        _
      %p128 = scmp.lt.s32.totalorder %s17, 2
      // Predicated region
      $region13: #{tpu_custom_call.1} parent=5 // pred_check
        %p129 = pneg %p128
      $region14: #{tpu_custom_call.1} parent=5 // pred_check_branch
        %131 = sbr.rel (%p129) target = $region16
      $region15: #{tpu_custom_call.1} parent=5 // pred_region
        // Predicated region
        $region17: #{tpu_custom_call.1} parent=15 // pred_check
          %p132 = pneg %p51
        $region18: #{tpu_custom_call.1} parent=15 // pred_check_branch
          %134 = sbr.rel (%p132) target = $region20
        $region19: #{tpu_custom_call.1} parent=15 // pred_region
          %s135 = sand.u32 %s41, 1
          %s136 = scalar_lea.sflag [#allocation3], %s135
          %s137 = sand.u32 %s41, 1
          %s138 = smul.addr %s137, 8
          %s139 = scalar_lea.vmem [#allocation2], %s138
          %s141 = ssub.s32 128, 128
          %142 = vsyncadd %s136, %s141
          %s143 = smul.addr %s24, 4
          %s144 = sadd.s32 %s25, %s143
          %s145 = smul.addr %s144, 32
          %s146 = scalar_lea.hbm %s0, %s145
          %s147 = sshll.u32 %s139, 4
          %s148 = int_to_ptr.vmem [resolvable:$true] %s147
          %153 = dma.hbm_to_vmem [thread:$0]  %s146, 128, %s148, %s136, 32, 32, 2
        $region20: #{tpu_custom_call.1} parent=15 // pred_fallthru
          _
        // Predicated region
        $region21: #{tpu_custom_call.1} parent=15 // pred_check
          %p154 = pneg %p79
        $region22: #{tpu_custom_call.1} parent=15 // pred_check_branch
          %156 = sbr.rel (%p154) target = $region24
        $region23: #{tpu_custom_call.1} parent=15 // pred_region
          %s157 = sand.u32 %s69, 1
          %s158 = scalar_lea.sflag [#allocation6], %s157
          %s159 = sand.u32 %s69, 1
          %s160 = smul.addr %s159, 2
          %s161 = scalar_lea.vmem [#allocation5], %s160
          %s163 = ssub.s32 32, 32
          %164 = vsyncadd %s158, %s163
          %s165 = sadd.s32 %s25, %s24
          %s166 = smul.addr %s165, 32
          %s167 = scalar_lea.hbm %s1, %s166
          %s169 = sshll.u32 %s161, 4
          %s170 = int_to_ptr.vmem [resolvable:$true] %s169
          %172 = dma.hbm_to_vmem [thread:$0]  %s167, 32, %s170, %s158
        $region24: #{tpu_custom_call.1} parent=15 // pred_fallthru
          _
      $region16: #{tpu_custom_call.1} parent=5 // pred_fallthru
        _
      %p173 = scmp.le.s32.totalorder 1, %s17
      %p174 = scmp.lt.s32.totalorder %s17, 3
      %p175 = pnand %p173, %p174
      %p176 = pneg %p175
      // Predicated region
      $region25: #{tpu_custom_call.1} parent=5 // pred_check
        _
      $region26: #{tpu_custom_call.1} parent=5 // pred_check_branch
        %178 = sbr.rel (%p175) target = $region28
      $region27: #{tpu_custom_call.1} parent=5 // pred_region
        %s179 = ssub.s32 %s17, 1
        %s180 = sand.u32 %s44, 1
        %s181 = scalar_lea.sflag [#allocation3], %s180
        %s182 = sand.u32 %s44, 1
        %s183 = smul.addr %s182, 8
        %s184 = scalar_lea.vmem [#allocation2], %s183
        // Predicated region
        $region29: #{tpu_custom_call.1} parent=27 // pred_check
          %p185 = pneg %p57
        $region30: #{tpu_custom_call.1} parent=27 // pred_check_branch
          %187 = sbr.rel (%p185) target = $region32
        $region31: #{tpu_custom_call.1} parent=27 // pred_region
          %188 = dma.done %s181, 128
        $region32: #{tpu_custom_call.1} parent=27 // pred_fallthru
          _
        %s189 = sand.u32 %s72, 1
        %s190 = scalar_lea.sflag [#allocation6], %s189
        %s191 = sand.u32 %s72, 1
        %s192 = smul.addr %s191, 2
        %s193 = scalar_lea.vmem [#allocation5], %s192
        // Predicated region
        $region33: #{tpu_custom_call.1} parent=27 // pred_check
          %p194 = pneg %p85
        $region34: #{tpu_custom_call.1} parent=27 // pred_check_branch
          %196 = sbr.rel (%p194) target = $region36
        $region35: #{tpu_custom_call.1} parent=27 // pred_region
          %197 = dma.done %s190, 32
        $region36: #{tpu_custom_call.1} parent=27 // pred_fallthru
          _
        %s198 = sand.u32 %s44, 1
        %s199 = scalar_lea.sflag [#allocation3], %s198
        %s200 = sand.u32 %s44, 1
        %s201 = smul.addr %s200, 8
        %s202 = scalar_lea.vmem [#allocation2], %s201
        %p203 = pneg %p57
        %p204 = pneg %p54
        %s205 = sand.u32 %s72, 1
        %s206 = scalar_lea.sflag [#allocation6], %s205
        %s207 = sand.u32 %s72, 1
        %s208 = smul.addr %s207, 2
        %s209 = scalar_lea.vmem [#allocation5], %s208
        %p210 = pneg %p85
        %p211 = pneg %p82
        %p212 = pneg %p113
        %p213 = pneg %p110
        %s214 = sand.u32 %s100, 1
        %s215 = scalar_lea.sflag [#allocation4], %s214
        %s216 = sand.u32 %s100, 1
        %s217 = scalar_lea.vmem [#allocation7], %s216
        %v218 = vld [vmem:[%s184] sm:$0x3]
        %s219 = scalar_lea.vmem %s184, 2 [#allocation2]
        %v220 = vld [vmem:[%s219] sm:$0x3]
        %vm221 = vcmp.gt.f32.partialorder %v220, %v218
        %v222 = vsel %vm221, %v220, %v218
        %v223 = vsel %vm221, 1.0, 0.0
        %s224 = scalar_lea.vmem %s184, 4 [#allocation2]
        %v225 = vld [vmem:[%s224] sm:$0x3]
        %vm226 = vcmp.gt.f32.partialorder %v225, %v222
        %v227 = vsel %vm226, %v225, %v222
        %v228 = vsel %vm226, 2.0, %v223
        %s229 = scalar_lea.vmem %s184, 6 [#allocation2]
        %v230 = vld [vmem:[%s229] sm:$0x3]
        %vm231 = vcmp.gt.f32.partialorder %v230, %v227
        %v232 = vsel %vm231, 3.0, %v228
        %v233 = vld [vmem:[%s193] sm:$0x3]
        %v234 = vcvt.s32.f32 %v233
        %v235 = vsub.f32 %v232, %v234
        %v236 = vand.u32 2147483647, %v235
        %v237 = vmul.f32 %v236, 2.0
        %v238 = vmul.f32 %v237, 1.442695
        %v239 = vpow.pop %v238
        %vm240 = vcmask 1041408
        %v241 = vsel %vm240, %v239, 0.0
        %v242 = vrot.slane %v241, 4
        %v243 = vadd.f32 %v241, %v242
        %v244 = vrot.slane %v243, 2
        %v245 = vadd.f32 %v243, %v244
        %v246 = vrot.slane %v245, 1
        %v247 = vadd.f32 %v245, %v246
        %248 = vst [vmem:[%s217] sm:$0x1] %v247
        %s249 = sand.u32 %s100, 1
        %s250 = scalar_lea.sflag [#allocation4], %s249
        %s251 = sand.u32 %s100, 1
        %s252 = scalar_lea.vmem [#allocation7], %s251
        // Predicated region
        $region37: #{tpu_custom_call.1} parent=27 // pred_check
          %p253 = pneg %p110
        $region38: #{tpu_custom_call.1} parent=27 // pred_check_branch
          %255 = sbr.rel (%p253) target = $region40
        $region39: #{tpu_custom_call.1} parent=27 // pred_region
          %s257 = ssub.s32 16, 16
          %258 = vsyncadd %s250, %s257
          %s259 = sadd.s32 %s27, %s26
          %s260 = smul.addr %s259, 16
          %s261 = scalar_lea.hbm %s2, %s260
          %s263 = sshll.u32 %s252, 4
          %s264 = int_to_ptr.vmem [resolvable:$true] %s263
          %266 = dma.vmem_to_hbm [thread:$0]  %s264, 16, %s261, %s250
        $region40: #{tpu_custom_call.1} parent=27 // pred_fallthru
          _
      $region28: #{tpu_custom_call.1} parent=5 // pred_fallthru
        _
      %p267 = scmp.le.s32.totalorder 2, %s17
      // Predicated region
      $region41: #{tpu_custom_call.1} parent=5 // pred_check
        %p268 = pneg %p267
      $region42: #{tpu_custom_call.1} parent=5 // pred_check_branch
        %270 = sbr.rel (%p268) target = $region44
      $region43: #{tpu_custom_call.1} parent=5 // pred_region
        %s271 = ssub.s32 %s17, 2
        // Predicated region
        $region45: #{tpu_custom_call.1} parent=43 // pred_check
          %p272 = pneg %p116
        $region46: #{tpu_custom_call.1} parent=43 // pred_check_branch
          %274 = sbr.rel (%p272) target = $region48
        $region47: #{tpu_custom_call.1} parent=43 // pred_region
          %s275 = sand.u32 %s101, 1
          %s276 = scalar_lea.sflag [#allocation4], %s275
          %s277 = sand.u32 %s101, 1
          %s278 = scalar_lea.vmem [#allocation7], %s277
          %279 = dma.done %s276, 16
        $region48: #{tpu_custom_call.1} parent=43 // pred_fallthru
          _
      $region44: #{tpu_custom_call.1} parent=5 // pred_fallthru
        _
    $region6: #{tpu_custom_call.1} parent=1 // loop_footer
      %s21 = sadd.s32 1, %s17
    $region7: #{tpu_custom_call.1} parent=1 // loop_footer_branch
      %16 = sbr.rel target = $region3
    $region8: #{tpu_custom_call.1} parent=1 // loop_exit
      _
    %280 = vsyncpa [#allocation3], 1
    %s281 = scalar_lea.sflag [#allocation3], 1
    %282 = vsyncpa %s281, 1
    %283 = vsyncpa [#allocation6], 1
    %s284 = scalar_lea.sflag [#allocation6], 1
    %285 = vsyncpa %s284, 1
    %286 = vsyncpa [#allocation4], 1
    %s287 = scalar_lea.sflag [#allocation4], 1
    %288 = vsyncpa %s287, 1

</llo_original>
